<compile_context>
chip_gen: v5e
topology: v5e:2x2
jax: 0.10.0
libtpu: 0.0.40
codegen_flags: <defaults>
</compile_context>

<pallas_src>
import math
import functools

import jax
import jax.numpy as jnp
from jax.experimental import pallas as pl
from jax.experimental.pallas import tpu as pltpu


# Approximate resident VMEM per point (f32, D=32 lane-padded to 128 lanes):
#   x double buffer   : 2 * 128 * 4  = 1024 B
#   x*x / relayout tmp: 2 * 128 * 4  = 1024 B (conservative)
#   [8, tile] f32 tmps: ~8 * 32      =  256 B
_BYTES_PER_POINT = 2304


def _round_up(a, b):
    return ((a + b - 1) // b) * b


def _vmem_budget_bytes():
    """Usable scoped-VMEM budget: 75% of physical per-core VMEM (48 MiB on
    v7x, 96 MiB on v5e/v6e), with a conservative fallback if the query fails."""
    cap = None
    try:
        cap = getattr(pltpu.get_tpu_info(), "vmem_capacity_bytes", None)
    except Exception:
        cap = None
    if not cap or int(cap) <= 0:
        cap = 64 << 20  # v7x per-core VMEM: smallest of current generations
    return (3 * int(cap)) // 4


def _num_tensorcores():
    """TensorCores reachable by one pallas_call via a 'parallel' grid axis
    (2 on megacore-style chips: v4 / v5p / v7x; 1 on v5e / v6e)."""
    try:
        kind = jax.devices()[0].device_kind.lower()
        if ("v7" in kind) or ("v4" in kind) or ("v5p" in kind):
            return 2
    except Exception:
        pass
    return 1


def _mixture_kernel(x_ref, a_ref, b_ref, c_ref, out_ref, *,
                    steps, tile_n, total_n, ragged):
    """One grid step: tile_n points in [K, tile_n] (points-on-lanes) layout;
    accumulates the per-component sum of responsibilities into out_ref."""
    i = pl.program_id(1)                      # inner (reduction) axis

    @pl.when(i == 0)
    def _():
        out_ref[...] = jnp.zeros_like(out_ref)

    x = x_ref[...]                            # [tile_n, D]  float32

    # logp (+ log w), points on lanes:  [K, tile_n]
    #   logq = sum_d x^2 * (-0.5/var) + sum_d x * (mu/var) + const_k
    nt = (((1,), (1,)), ((), ()))             # contract D of both operands (NT)
    logq = (jax.lax.dot_general(a_ref[...], x * x, nt,
                                preferred_element_type=jnp.float32)
            + jax.lax.dot_general(b_ref[...], x, nt,
                                  preferred_element_type=jnp.float32)
            + c_ref[...])                     # [K, tile_n]  (+ [K,1] broadcast)

    # Softmax-style normalization over the component (sublane) axis.
    shift = jnp.max(logq, axis=0, keepdims=True)            # [1, tile_n]
    p = jnp.exp(logq - shift)                                # [K, tile_n]
    denom = jnp.sum(p, axis=0, keepdims=True)                # [1, tile_n]
    resp = p * pl.reciprocal(denom, approx=False)            # [K, tile_n]
    # (approx=True would use the EUP, but its ~1e-3 rel. error can exceed the
    #  1e-4 validation tolerance, so keep the exact reciprocal.)

    if not ragged:
        out_ref[...] += jnp.sum(resp, axis=1, keepdims=True)     # [K, 1]
    else:
        # Only tiles that cross the N boundary pay for the mask.  `base` is the
        # tile's *logical* column origin; the x BlockSpec clamps fully-OOB tiles
        # to the last in-bounds block, but masking uses the logical position so
        # those tiles contribute exactly zero.
        base = (pl.program_id(0) * steps + i) * tile_n
        in_bounds = base + tile_n <= total_n

        @pl.when(in_bounds)
        def _():
            out_ref[...] += jnp.sum(resp, axis=1, keepdims=True)

        @pl.when(jnp.logical_not(in_bounds))
        def _():
            col = jax.lax.broadcasted_iota(jnp.int32, (1, tile_n), 1) + base
            # Select (not multiply) so NaN/Inf in garbage columns cannot leak.
            masked = jnp.where(col < total_n, resp, 0.0)
            out_ref[...] += jnp.sum(masked, axis=1, keepdims=True)


def mixture_forward(x, mu, sigma, weights, *, tile_n=16384, n_splits=None):
    """x: [N, D]; mu, sigma: [K, D]; weights: [K, 1] or [K] (positive).
    Returns [K] = mean responsibility per component (Mixture.forward)."""
    N, D = x.shape
    K = mu.shape[0]

    # log(weights) is folded into the per-component constant, so weights must
    # be strictly positive (true for cloudpred).  Best-effort check when the
    # weights are concrete (silently skipped under jit tracing).
    try:
        w_min = float(jnp.min(weights))
    except Exception:
        w_min = None
    if w_min is not None and not (w_min > 0.0):
        raise ValueError("Mixture weights must be strictly positive.")

    # Hoisted per-component constants (tiny, resident in VMEM).
    var = sigma * sigma                                    # [K, D]
    inv_var = 1.0 / var
    a = (-0.5) * inv_var                                   # [K, D]
    b = mu * inv_var                                       # [K, D]
    # const_k = -0.5*(sum mu^2/var + sum log(2*pi*var)) + log(w_k)
    c = (-0.5 * (jnp.sum(mu * mu * inv_var, axis=1)
                 + jnp.sum(jnp.log(2.0 * math.pi * var), axis=1))
         + jnp.log(jnp.reshape(weights, (K,)))).reshape(K, 1)   # [K, 1]

    # Generation-aware work split: 2 only on chips with 2 TensorCores.
    if n_splits is None:
        n_splits = _num_tensorcores()
    n_splits = int(max(1, min(int(n_splits), pl.cdiv(N, 128))))

    # Tile sizing: points sit on lanes -> multiple of 128, as large as the
    # per-core VMEM budget allows (HBM / per-step-overhead bound kernel).
    budget = _vmem_budget_bytes()
    tile_cap = max(128, ((budget - (4 << 20)) // _BYTES_PER_POINT) // 128 * 128)
    per_split = pl.cdiv(N, n_splits)
    tile = max(128, min(_round_up(int(tile_n), 128), tile_cap,
                        _round_up(per_split, 128)))
    steps = pl.cdiv(N, n_splits * tile)
    ragged = (n_splits * steps * tile != N)

    # No jnp.pad of x (that would cost a full extra HBM read+write): the ragged
    # tail is masked in-kernel; tiles whose logical start lies past N are
    # clamped here to the last in-bounds block (and fully masked to zero).
    last_block = max(pl.cdiv(N, tile) - 1, 0)

    def x_index_map(cidx, i):
        return (jnp.minimum(cidx * steps + i, last_block), 0)

    kernel = functools.partial(_mixture_kernel, steps=steps, tile_n=tile,
                               total_n=N, ragged=ragged)

    est_bytes = tile * _BYTES_PER_POINT + (1 << 20)
    cp_kwargs = dict(dimension_semantics=("parallel", "arbitrary"))
    if est_bytes > (12 << 20):
        # Above the smallest default scoped-VMEM limit (16 MiB on v5e): raise
        # it, but never past 75% of physical VMEM (48 MiB on v7x).
        cp_kwargs["vmem_limit_bytes"] = int(min(est_bytes + (4 << 20), budget))

    cost = pl.CostEstimate(
        flops=4 * K * D * N,
        transcendentals=K * N,
        bytes_accessed=N * D * 4 + (2 * K * D + 2 * K + n_splits * K) * 4,
    )

    # TODO(synk): optionally accept a pre-transposed [D, N] x (lane-dense block,
    # plain NN contraction) when the caller already stores it that way; doing a
    # per-call transpose here would add a full extra HBM round-trip.
    out = pl.pallas_call(
        kernel,
        out_shape=jax.ShapeDtypeStruct((n_splits, K, 1), jnp.float32),
        grid=(n_splits, steps),
        in_specs=[
            pl.BlockSpec((tile, D), x_index_map),               # x
            pl.BlockSpec((K, D), lambda cidx, i: (0, 0)),       # -0.5/var
            pl.BlockSpec((K, D), lambda cidx, i: (0, 0)),       # mu/var
            pl.BlockSpec((K, 1), lambda cidx, i: (0, 0)),       # const + log w
        ],
        out_specs=pl.BlockSpec((None, K, 1), lambda cidx, i: (cidx, 0, 0)),
        compiler_params=pltpu.CompilerParams(**cp_kwargs),
        cost_estimate=cost,
    )(x, a, b, c)

    # Combine per-core partial sums and take the mean over the true N points.
    return jnp.sum(out[:, :, 0], axis=0) / float(N)               # [K]


def mixture_reference(x, mu, sigma, weights):
    """Pure-JAX transcription of PyTorch Mixture.forward with diagonal
    Gaussian components (cloudpred-style)."""
    N, D = x.shape
    K = mu.shape[0]
    logp = jnp.stack([
        -0.5 * jnp.sum(((x - mu[k]) / sigma[k]) ** 2, axis=1)
        - jnp.sum(jnp.log(sigma[k]))
        - 0.5 * D * math.log(2.0 * math.pi)
        for k in range(K)
    ])                                                     # [K, N]
    shift = jnp.max(logp, axis=0)                          # [N]
    p = jnp.exp(logp - shift) * jnp.reshape(weights, (K, 1))
    return jnp.mean(p / jnp.sum(p, axis=0), axis=1)        # [K]


if __name__ == "__main__":
    key = jax.random.PRNGKey(0)
    k_x, k_mu, k_sig, k_w = jax.random.split(key, 4)

    D, K = 32, 4
    mu = 0.5 * jax.random.normal(k_mu, (K, D), dtype=jnp.float32)
    sigma = 0.5 + jnp.abs(jax.random.normal(k_sig, (K, D), dtype=jnp.float32))
    # Mixture weights (the Parameter `weights.unsqueeze_(1)` -> shape [K, 1]).
    weights = (0.5 + jax.random.uniform(k_w, (K,), dtype=jnp.float32)).reshape(K, 1)

    cases = [
        dict(N=128, kwargs={}),                                 # aligned, auto split
        dict(N=300, kwargs={}),                                 # ragged tail (masked, no pad)
        dict(N=768, kwargs=dict(tile_n=256, n_splits=2)),       # multi-split + clamped OOB tile
    ]
    for case in cases:
        N = case["N"]
        x = jax.random.normal(jax.random.fold_in(k_x, N), (N, D), dtype=jnp.float32)
        out = jax.block_until_ready(
            mixture_forward(x, mu, sigma, weights, **case["kwargs"]))
        ref = mixture_reference(x, mu, sigma, weights)
        assert out.shape == (K,)
        assert jnp.allclose(out, ref, atol=1e-4, rtol=1e-4), (N, out, ref)

    print("KERNEL_OK")
</pallas_src>

<mosaic_0001>
module attributes {stable_mosaic.version = 11 : i64} {
  func.func @_mixture_kernel(%arg0: i32, %arg1: i32, %arg2: memref<128x32xf32, #tpu.memory_space<vmem>>, %arg3: memref<4x32xf32, #tpu.memory_space<vmem>>, %arg4: memref<4x32xf32, #tpu.memory_space<vmem>>, %arg5: memref<4x1xf32, #tpu.memory_space<vmem>>, %arg6: memref<1x4x1xf32, #tpu.memory_space<vmem>>) attributes {dimension_semantics = [#tpu.dimension_semantics<parallel>, #tpu.dimension_semantics<arbitrary>], iteration_bounds = array<i64: 1, 1>, scalar_prefetch = 0 : i64, scratch_operands = 0 : i64, tpu.core_type = #tpu.core_type<tc>, window_params = [{transform_indices = @transform_0, window_bounds = array<i64: 128, 32>}, {pipeline_mode = #tpu.pipeline_mode<synchronous>, transform_indices = @transform_1, window_bounds = array<i64: 4, 32>}, {pipeline_mode = #tpu.pipeline_mode<synchronous>, transform_indices = @transform_2, window_bounds = array<i64: 4, 32>}, {pipeline_mode = #tpu.pipeline_mode<synchronous>, transform_indices = @transform_3, window_bounds = array<i64: 4, 1>}, {transform_indices = @transform_4, window_bounds = array<i64: 1, 4, 1>}]} {
    %c0_i32 = arith.constant 0 : i32
    %0 = arith.cmpi eq, %arg1, %c0_i32 : i32
    %1 = arith.extui %0 : i1 to i32
    %c0_i32_0 = arith.constant 0 : i32
    %2 = arith.cmpi ne, %1, %c0_i32_0 : i32
    scf.if %2 {
      %cst_18 = arith.constant 0.000000e+00 : f32
      %31 = vector.broadcast %cst_18 : f32 to vector<4x1xf32>
      %c0_19 = arith.constant 0 : index
      %c0_20 = arith.constant 0 : index
      %c0_21 = arith.constant 0 : index
      %32 = vector.load %arg6[%c0_19, %c0_20, %c0_21] : memref<1x4x1xf32, #tpu.memory_space<vmem>>, vector<1x4x1xf32>
      %33 = vector.shape_cast %32 : vector<1x4x1xf32> to vector<4x1xf32>
      %34 = vector.shape_cast %31 : vector<4x1xf32> to vector<1x4x1xf32>
      tpu.vector_store %arg6[%c0_19, %c0_20, %c0_21], %34 {strides = array<i32>} : memref<1x4x1xf32, #tpu.memory_space<vmem>>, vector<1x4x1xf32>,
    } else {
    }
    %c0 = arith.constant 0 : index
    %c0_1 = arith.constant 0 : index
    %3 = vector.load %arg2[%c0, %c0_1] : memref<128x32xf32, #tpu.memory_space<vmem>>, vector<128x32xf32>
    %c0_2 = arith.constant 0 : index
    %c0_3 = arith.constant 0 : index
    %4 = vector.load %arg3[%c0_2, %c0_3] : memref<4x32xf32, #tpu.memory_space<vmem>>, vector<4x32xf32>
    %5 = arith.mulf %3, %3 : vector<128x32xf32>
    %cst = arith.constant dense<0.000000e+00> : vector<4x128xf32>
    %6 = tpu.matmul %4, %5, %cst {dimension_numbers = #tpu.dot_dimension_numbers<[1], [1], [0], [0], [0, 0, 1, 0], [], []>} : vector<4x32xf32>, vector<128x32xf32>, vector<4x128xf32> -> vector<4x128xf32>
    %c0_4 = arith.constant 0 : index
    %c0_5 = arith.constant 0 : index
    %7 = vector.load %arg4[%c0_4, %c0_5] : memref<4x32xf32, #tpu.memory_space<vmem>>, vector<4x32xf32>
    %cst_6 = arith.constant dense<0.000000e+00> : vector<4x128xf32>
    %8 = tpu.matmul %7, %3, %cst_6 {dimension_numbers = #tpu.dot_dimension_numbers<[1], [1], [0], [0], [0, 0, 1, 0], [], []>} : vector<4x32xf32>, vector<128x32xf32>, vector<4x128xf32> -> vector<4x128xf32>
    %9 = arith.addf %6, %8 : vector<4x128xf32>
    %c0_7 = arith.constant 0 : index
    %c0_8 = arith.constant 0 : index
    %10 = vector.load %arg5[%c0_7, %c0_8] : memref<4x1xf32, #tpu.memory_space<vmem>>, vector<4x1xf32>
    %11 = vector.broadcast %10 : vector<4x1xf32> to vector<4x128xf32>
    %12 = arith.addf %9, %11 : vector<4x128xf32>
    %cst_9 = arith.constant dense<0xFF800000> : vector<128xf32>
    %13 = vector.multi_reduction <maximumf>, %12, %cst_9 [0] : vector<4x128xf32> to vector<128xf32>
    %14 = vector.shape_cast %13 : vector<128xf32> to vector<1x128xf32>
    %15 = vector.broadcast %14 : vector<1x128xf32> to vector<4x128xf32>
    %16 = arith.subf %12, %15 : vector<4x128xf32>
    %17 = math.exp %16 : vector<4x128xf32>
    %cst_10 = arith.constant dense<0.000000e+00> : vector<128xf32>
    %18 = vector.multi_reduction <add>, %17, %cst_10 [0] : vector<4x128xf32> to vector<128xf32>
    %19 = vector.shape_cast %18 : vector<128xf32> to vector<1x128xf32>
    %20 = tpu.reciprocal %19 : vector<1x128xf32> -> vector<1x128xf32>
    %21 = vector.broadcast %20 : vector<1x128xf32> to vector<4x128xf32>
    %22 = arith.mulf %17, %21 : vector<4x128xf32>
    %c0_11 = arith.constant 0 : index
    %c0_12 = arith.constant 0 : index
    %c0_13 = arith.constant 0 : index
    %23 = vector.load %arg6[%c0_11, %c0_12, %c0_13] : memref<1x4x1xf32, #tpu.memory_space<vmem>>, vector<1x4x1xf32>
    %24 = vector.shape_cast %23 : vector<1x4x1xf32> to vector<4x1xf32>
    %cst_14 = arith.constant dense<0.000000e+00> : vector<4xf32>
    %25 = vector.multi_reduction <add>, %22, %cst_14 [1] : vector<4x128xf32> to vector<4xf32>
    %26 = vector.shape_cast %25 : vector<4xf32> to vector<4x1xf32>
    %27 = arith.addf %24, %26 : vector<4x1xf32>
    %c0_15 = arith.constant 0 : index
    %c0_16 = arith.constant 0 : index
    %c0_17 = arith.constant 0 : index
    %28 = vector.load %arg6[%c0_15, %c0_16, %c0_17] : memref<1x4x1xf32, #tpu.memory_space<vmem>>, vector<1x4x1xf32>
    %29 = vector.shape_cast %28 : vector<1x4x1xf32> to vector<4x1xf32>
    %30 = vector.shape_cast %27 : vector<4x1xf32> to vector<1x4x1xf32>
    tpu.vector_store %arg6[%c0_15, %c0_16, %c0_17], %30 {strides = array<i32>} : memref<1x4x1xf32, #tpu.memory_space<vmem>>, vector<1x4x1xf32>,
    return
  }
  func.func @transform_0(%arg0: i32, %arg1: i32) -> (i32, i32) {
    %c1_i32 = arith.constant 1 : i32
    %0 = arith.muli %arg0, %c1_i32 : i32
    %1 = arith.addi %0, %arg1 : i32
    %c0_i32 = arith.constant 0 : i32
    %2 = arith.minsi %1, %c0_i32 : i32
    %c0_i32_0 = arith.constant 0 : i32
    %c0_i32_1 = arith.constant 0 : i32
    return %2, %c0_i32_0 : i32, i32
  }
  func.func @transform_1(%arg0: i32, %arg1: i32) -> (i32, i32) {
    %c0_i32 = arith.constant 0 : i32
    %c0_i32_0 = arith.constant 0 : i32
    %c0_i32_1 = arith.constant 0 : i32
    return %c0_i32, %c0_i32_0 : i32, i32
  }
  func.func @transform_2(%arg0: i32, %arg1: i32) -> (i32, i32) {
    %c0_i32 = arith.constant 0 : i32
    %c0_i32_0 = arith.constant 0 : i32
    %c0_i32_1 = arith.constant 0 : i32
    return %c0_i32, %c0_i32_0 : i32, i32
  }
  func.func @transform_3(%arg0: i32, %arg1: i32) -> (i32, i32) {
    %c0_i32 = arith.constant 0 : i32
    %c0_i32_0 = arith.constant 0 : i32
    %c0_i32_1 = arith.constant 0 : i32
    return %c0_i32, %c0_i32_0 : i32, i32
  }
  func.func @transform_4(%arg0: i32, %arg1: i32) -> (i32, i32, i32) {
    %c0_i32 = arith.constant 0 : i32
    %c0_i32_0 = arith.constant 0 : i32
    %c0_i32_1 = arith.constant 0 : i32
    return %arg0, %c0_i32, %c0_i32_0 : i32, i32, i32
  }
}

</mosaic_0001>

<llo_original>
// kernel: tpu_custom_call.1
$region0: #{tpu_custom_call.1}
  #allocation0 [shape = 'u32[]', space=smem, size = 0x4, offset = 0x4, fixed_abs, tag = 'smem constant byte address 0x4 - core index']
  #allocation1 [shape = 'u32[72,128]{1,0:T(1,128)}', space=vmem, size = 0x9000, scoped, tag = 'internal scratch']
  %s0 = inlined_call_operand.vmem [shape: f32[128,32], index: 0, kind: input, shape index: {}]
  %s1 = inlined_call_operand.vmem [shape: f32[4,32], index: 1, kind: input, shape index: {}]
  %s2 = inlined_call_operand.vmem [shape: f32[4,32], index: 2, kind: input, shape index: {}]
  %s3 = inlined_call_operand.vmem [shape: f32[4,1], index: 3, kind: input, shape index: {}]
  %s4 = inlined_call_operand.vmem [shape: f32[1,4,1], index: 4, kind: output, shape index: {}]
  %s5 = sld [smem:[#allocation0]]
  $region30: #{tpu_custom_call.1} parent=0
    _
  %s7 = ssub.s32 1, %s5
  %s8 = scalar_select 0, %s7, %s5
  // Predicated region
  $region2: #{tpu_custom_call.1} parent=0 // pred_check
    _
  $region3: #{tpu_custom_call.1} parent=0 // pred_check_branch
    %10 = sbr.rel (0) target = $region5
  $region4: #{tpu_custom_call.1} parent=0 // pred_region
    %s11 = sadd.s32 0, 0
    %p12 = scmp.lt.s32.totalorder %s11, 0
    %s13 = scalar_select %p12, %s11, 0
    %s14 = smul.u32 16, %s13
    %p15 = scmp.lt.s32.totalorder %s14, 15
    %s16 = scalar_select %p15, %s14, 15
    %s17 = smul.addr %s16, 8
    %s18 = scalar_lea.vmem %s0, %s17
    %s19 = sadd.s32 0, 0
    %p20 = scmp.lt.s32.totalorder %s19, 0
    %s21 = scalar_select %p20, %s19, 0
    %s22 = smul.u32 16, %s21
  $region5: #{tpu_custom_call.1} parent=0 // pred_fallthru
    _
  // Predicated region
  $region6: #{tpu_custom_call.1} parent=0 // pred_check
    _
  $region7: #{tpu_custom_call.1} parent=0 // pred_check_branch
    %24 = sbr.rel (0) target = $region9
  $region8: #{tpu_custom_call.1} parent=0 // pred_region
    _
  $region9: #{tpu_custom_call.1} parent=0 // pred_fallthru
    _
  // Predicated region
  $region10: #{tpu_custom_call.1} parent=0 // pred_check
    _
  $region11: #{tpu_custom_call.1} parent=0 // pred_check_branch
    %26 = sbr.rel (0) target = $region13
  $region12: #{tpu_custom_call.1} parent=0 // pred_region
    _
  $region13: #{tpu_custom_call.1} parent=0 // pred_fallthru
    _
  // Predicated region
  $region14: #{tpu_custom_call.1} parent=0 // pred_check
    _
  $region15: #{tpu_custom_call.1} parent=0 // pred_check_branch
    %28 = sbr.rel (0) target = $region17
  $region16: #{tpu_custom_call.1} parent=0 // pred_region
    _
  $region17: #{tpu_custom_call.1} parent=0 // pred_fallthru
    _
  %s29 = sadd.s32 0, 0
  %p30 = scmp.lt.s32.totalorder %s29, 0
  %s31 = scalar_select %p30, %s29, 0
  %s32 = smul.u32 16, %s31
  %p33 = scmp.lt.s32.totalorder %s32, 15
  %s34 = scalar_select %p33, %s32, 15
  %s35 = smul.addr %s34, 8
  %s36 = scalar_lea.vmem %s0, %s35
  %s37 = sadd.s32 0, 0
  %p38 = scmp.lt.s32.totalorder %s37, 0
  %s39 = scalar_select %p38, %s37, 0
  %s40 = smul.u32 16, %s39
  %p41 = scmp.lt.s32.totalorder %s40, 15
  %s42 = scalar_select %p41, %s40, 15
  %s43 = smul.addr %s42, 8
  %s44 = scalar_lea.vmem %s0, %s43
  %s45 = sadd.s32 0, 0
  %p46 = scmp.lt.s32.totalorder %s45, 0
  %s47 = scalar_select %p46, %s45, 0
  %s48 = smul.u32 16, %s47
  %p49 = scmp.eq.s32.totalorder 0, 0
  // Predicated region
  $region18: #{tpu_custom_call.1} parent=0 // pred_check
    %p50 = pneg %p49
  $region19: #{tpu_custom_call.1} parent=0 // pred_check_branch
    %52 = sbr.rel (%p50) target = $region21
  $region20: #{tpu_custom_call.1} parent=0 // pred_region
    %vm53 = vcmask 3072
    %54 = vst.msk [vmem:[%s4] sm:$0xf] %vm53, 0.0
  $region21: #{tpu_custom_call.1} parent=0 // pred_fallthru
    _
  %v55 = vld [vmem:[%s44] sm:$0xff]
  %v56 = vld [vmem:[%s44 + $0x8] sm:$0xff]
  %v57 = vld [vmem:[%s44 + $0x10] sm:$0xff]
  %v58 = vld [vmem:[%s44 + $0x18] sm:$0xff]
  %v59 = vld [vmem:[%s44 + $0x20] sm:$0xff]
  %v60 = vld [vmem:[%s44 + $0x28] sm:$0xff]
  %v61 = vld [vmem:[%s44 + $0x30] sm:$0xff]
  %v62 = vld [vmem:[%s44 + $0x38] sm:$0xff]
  %v63 = vld [vmem:[%s44 + $0x40] sm:$0xff]
  %v64 = vld [vmem:[%s44 + $0x48] sm:$0xff]
  %v65 = vld [vmem:[%s44 + $0x50] sm:$0xff]
  %v66 = vld [vmem:[%s44 + $0x58] sm:$0xff]
  %v67 = vld [vmem:[%s44 + $0x60] sm:$0xff]
  %v68 = vld [vmem:[%s44 + $0x68] sm:$0xff]
  %v69 = vld [vmem:[%s44 + $0x70] sm:$0xff]
  %v70 = vld [vmem:[%s44 + $0x78] sm:$0xff]
  %v71 = vld [vmem:[%s1] sm:$0xf]
  %v72 = vmul.f32 %v55, %v55
  %v73 = vmul.f32 %v56, %v56
  %v74 = vmul.f32 %v57, %v57
  %v75 = vmul.f32 %v58, %v58
  %v76 = vmul.f32 %v59, %v59
  %v77 = vmul.f32 %v60, %v60
  %v78 = vmul.f32 %v61, %v61
  %v79 = vmul.f32 %v62, %v62
  %v80 = vmul.f32 %v63, %v63
  %v81 = vmul.f32 %v64, %v64
  %v82 = vmul.f32 %v65, %v65
  %v83 = vmul.f32 %v66, %v66
  %v84 = vmul.f32 %v67, %v67
  %v85 = vmul.f32 %v68, %v68
  %v86 = vmul.f32 %v69, %v69
  %v87 = vmul.f32 %v70, %v70
  %v88 = vld [vmem:[%s2] sm:$0xf]
  %vm89 = vcmask 261120
  %v91 = vsel %vm89, %v88, 0
  %v94 = vsel %vm89, %v55, 0
  %v97 = vsel %vm89, %v56, 0
  %v100 = vsel %vm89, %v57, 0
  %v103 = vsel %vm89, %v58, 0
  %v106 = vsel %vm89, %v59, 0
  %v109 = vsel %vm89, %v60, 0
  %v112 = vsel %vm89, %v61, 0
  %v115 = vsel %vm89, %v62, 0
  %v118 = vsel %vm89, %v63, 0
  %v121 = vsel %vm89, %v64, 0
  %v124 = vsel %vm89, %v65, 0
  %v127 = vsel %vm89, %v66, 0
  %v130 = vsel %vm89, %v67, 0
  %v133 = vsel %vm89, %v68, 0
  %v136 = vsel %vm89, %v69, 0
  %v139 = vsel %vm89, %v70, 0
  %141 = vmatpush.xpose.msra.mxu0 %v139
  %142 = vmatpush.xpose.msra.mxu0 %v136
  %143 = vmatpush.xpose.msra.mxu0 %v133
  %144 = vmatpush.xpose.msra.mxu0 %v130
  %145 = vmatpush.xpose.msra.mxu0 %v127
  %146 = vmatpush.xpose.msra.mxu0 %v124
  %147 = vmatpush.xpose.msra.mxu0 %v121
  %148 = vmatpush.xpose.msra.mxu0 %v118
  %149 = vmatpush.xpose.msra.mxu0 %v115
  %150 = vmatpush.xpose.msra.mxu0 %v112
  %151 = vmatpush.xpose.msra.mxu0 %v109
  %152 = vmatpush.xpose.msra.mxu0 %v106
  %153 = vmatpush.xpose.msra.mxu0 %v103
  %154 = vmatpush.xpose.msra.mxu0 %v100
  %155 = vmatpush.xpose.msra.mxu0 %v97
  %156 = vmatpush.xpose.msra.mxu0 %v94
  %157 = vmatmul.f32.gmra.mxu0 %v91
  %v158 = vpop.f32.mrf.mxu0
  %v159 = vadd.f32 0.0, %v158
  %160 = vdwg.mxu0
  %v162 = vsel %vm89, %v71, 0
  %v165 = vsel %vm89, %v72, 0
  %v168 = vsel %vm89, %v73, 0
  %v171 = vsel %vm89, %v74, 0
  %v174 = vsel %vm89, %v75, 0
  %v177 = vsel %vm89, %v76, 0
  %v180 = vsel %vm89, %v77, 0
  %v183 = vsel %vm89, %v78, 0
  %v186 = vsel %vm89, %v79, 0
  %v189 = vsel %vm89, %v80, 0
  %v192 = vsel %vm89, %v81, 0
  %v195 = vsel %vm89, %v82, 0
  %v198 = vsel %vm89, %v83, 0
  %v201 = vsel %vm89, %v84, 0
  %v204 = vsel %vm89, %v85, 0
  %v207 = vsel %vm89, %v86, 0
  %v210 = vsel %vm89, %v87, 0
  %212 = vmatpush.xpose.msra.mxu0 %v210
  %213 = vmatpush.xpose.msra.mxu0 %v207
  %214 = vmatpush.xpose.msra.mxu0 %v204
  %215 = vmatpush.xpose.msra.mxu0 %v201
  %216 = vmatpush.xpose.msra.mxu0 %v198
  %217 = vmatpush.xpose.msra.mxu0 %v195
  %218 = vmatpush.xpose.msra.mxu0 %v192
  %219 = vmatpush.xpose.msra.mxu0 %v189
  %220 = vmatpush.xpose.msra.mxu0 %v186
  %221 = vmatpush.xpose.msra.mxu0 %v183
  %222 = vmatpush.xpose.msra.mxu0 %v180
  %223 = vmatpush.xpose.msra.mxu0 %v177
  %224 = vmatpush.xpose.msra.mxu0 %v174
  %225 = vmatpush.xpose.msra.mxu0 %v171
  %226 = vmatpush.xpose.msra.mxu0 %v168
  %227 = vmatpush.xpose.msra.mxu0 %v165
  %228 = vmatmul.f32.gmra.mxu0 %v162
  %v229 = vpop.f32.mrf.mxu0
  %v230 = vadd.f32 %v159, %v229
  %231 = vdwg.mxu0
  %v232 = vld [vmem:[%s3] sm:$0xf]
  %234 = vset.pattern.permute.xlu0 0
  %235 = vperm.xlu0 %234, %v232
  %v236 = vpop.permute.xlu0 %235
  %v238 = vadd.f32 %v230, %v236
  %vm239 = vcmask 1043456
  %v240 = vsel %vm239, %v238, -inf
  %v241 = vrot.slane %v240, 4
  %v242 = vmax.f32 %v240, %v241
  %v243 = vrot.slane %v242, 2
  %v244 = vmax.f32 %v242, %v243
  %v245 = vrot.slane %v244, 1
  %v246 = vmax.f32 %v244, %v245
  %v247 = vsub.f32 %v238, %v246
  %v248 = vmul.f32 %v247, 1.442695
  %v249 = vpow.pop %v248
  %v250 = vsel %vm239, %v249, 0.0
  %v251 = vrot.slane %v250, 4
  %v252 = vadd.f32 %v250, %v251
  %v253 = vrot.slane %v252, 2
  %v254 = vadd.f32 %v252, %v253
  %v255 = vrot.slane %v254, 1
  %v256 = vadd.f32 %v254, %v255
  %v257 = vrcp.pop %v256
  %v258 = vmul.f32 %v256, %v257
  %v259 = vsub.f32 1.0, %v258
  %v260 = vmul.f32 %v257, %v259
  %v261 = vadd.f32 %v257, %v260
  %vm262 = vweird.f32 %v256
  %vm263 = vweird.f32 %v257
  %vm264 = vmor %vm262, %vm263
  %v265 = vsel %vm264, %v257, %v261
  %v266 = vand.u32 2147483647, %v256
  %vm267 = vcmp.eq.f32.partialorder %v266, 8.507059e+37
  %v268 = vand.u32 %v256, 2147483648
  %v269 = vor.u32 1.1754944e-38, %v268
  %v270 = vsel %vm267, %v269, %v265
  %v271 = vmul.f32 %v249, %v270
  %v272 = vld [vmem:[%s4] sm:$0xf]
  %v273 = vsel %vm239, %v271, 0.0
  %274 = vadd.xlane.f32.xlu0 %v273
  %v275 = vpop.xlane.xlu0 %274
  %v276 = vadd.f32 %v272, %v275
  %vm277 = vcmask 3072
  %278 = vst.msk [vmem:[%s4] sm:$0xf] %vm277, %v276
  // Predicated region
  $region22: #{tpu_custom_call.1} parent=0 // pred_check
    _
  $region23: #{tpu_custom_call.1} parent=0 // pred_check_branch
    %280 = sbr.rel (0) target = $region25
  $region24: #{tpu_custom_call.1} parent=0 // pred_region
    _
  $region25: #{tpu_custom_call.1} parent=0 // pred_fallthru
    _
  // Predicated region
  $region26: #{tpu_custom_call.1} parent=0 // pred_check
    _
  $region27: #{tpu_custom_call.1} parent=0 // pred_check_branch
    %282 = sbr.rel (0) target = $region29
  $region28: #{tpu_custom_call.1} parent=0 // pred_region
    _
  $region29: #{tpu_custom_call.1} parent=0 // pred_fallthru
    _

</llo_original>
